<compile_context>
chip_gen: v6e
topology: v6e:2x2x1
jax: 0.10.0
libtpu: 0.0.40
codegen_flags: <defaults>
</compile_context>

<pallas_src>
import functools

import jax
import jax.numpy as jnp
from jax import lax
from jax.experimental import pallas as pl
from jax.experimental.pallas import tpu as pltpu


def _round_up(x, m):
    return (x + m - 1) // m * m


def _choose_tiling(npatches, target=512):
    """Pick (tile, padded_npatches).

    Prefers large MXU/lane-friendly tiles; pads npatches (keys masked in-kernel,
    padded query rows dropped in the wrapper) instead of falling back to tiny
    lane-sparse tiles (masked vst, nq^2 grid-step overhead).
    """
    if npatches <= target:
        n_pad = _round_up(npatches, 8)
        return n_pad, n_pad                           # single tile
    for t in (target, 256, 128):
        if npatches % t == 0:
            return t, npatches
    return 256, _round_up(npatches, 256)              # pad + mask path


def _default_exp_dtype(matmul_dtype):
    """bf16 exp only where the EUP supports it (v6e/v7x); f32 elsewhere."""
    if jnp.dtype(matmul_dtype) == jnp.dtype(jnp.float32):
        return jnp.float32
    try:
        kind = jax.devices()[0].device_kind.lower()
    except Exception:
        kind = ""
    if any(t in kind for t in ("v6", "v7", "tpu7")):
        return jnp.bfloat16
    return jnp.float32                                # v5e & older: no bf16 EUP


def _patchnce_kernel(pos_ref, q_ref, k_ref, loss_ref, m_ref, l_ref, *,
                     tile, n_valid, padded, mask_val, exp_dtype, k_resident):
    """One (bmm_batch, q_tile, k_tile) grid step.

    Logits are computed transposed, s[j, i] = <q_i, k_j> / T, so per-query
    softmax statistics live along the lane axis as (1, TQ) rows.
    """
    qi = pl.program_id(1)
    ki = pl.program_id(2)
    nk = pl.num_programs(2)

    @pl.when(ki == 0)
    def _init():
        # Class 0 (the exact-f32 positive logit from the wrapper) seeds the
        # online-logsumexp state: m = pos, l = exp(pos - pos) = 1.
        m_ref[...] = pos_ref[...].reshape(m_ref.shape)
        l_ref[...] = jnp.ones(l_ref.shape, dtype=l_ref.dtype)

    q = q_ref[0]                                       # (TQ, D), pre-scaled by 1/T, matmul dtype
    if k_resident:
        start = pl.multiple_of(ki * tile, tile)
        k = k_ref[0, pl.ds(start, tile), :]            # slice of the resident slab
    else:
        k = k_ref[0]                                   # streamed (TK, D) tile

    # Transposed logits on the MXU; f32 accumulation. No k.T pass needed.
    s = lax.dot_general(k, q, dimension_numbers=(((1,), (1,)), ((), ())),
                        preferred_element_type=jnp.float32)     # (TK, TQ)

    if padded:
        # Padded key rows (global index >= n_valid) never contribute.
        row = ki * tile + lax.broadcasted_iota(jnp.int32, s.shape, 0)
        s = jnp.where(row < n_valid, s, -1e30)

    def _online_update(s_tile):
        m_prev = m_ref[...]                            # (1, TQ)
        l_prev = l_ref[...]
        m_new = jnp.maximum(m_prev, jnp.max(s_tile, axis=0, keepdims=True))
        # exp in exp_dtype (bf16 on v6e/v7x halves EUP pushes; f32 on v5e).
        p = jnp.exp((s_tile - m_new).astype(exp_dtype))
        if tile >= 128:
            # Row-sum on the MXU via a (1,TK)x(TK,TQ) ones matmul with f32
            # accumulation -> frees the VALU/XLU slots on the hot path.
            ones = jnp.ones((1, tile), dtype=p.dtype)
            psum = lax.dot_general(
                ones, p, dimension_numbers=(((1,), (0,)), ((), ())),
                preferred_element_type=jnp.float32)
        else:
            psum = jnp.sum(p.astype(jnp.float32), axis=0, keepdims=True)
        l_ref[...] = jnp.exp(m_prev - m_new) * l_prev + psum
        m_ref[...] = m_new

    @pl.when(qi == ki)
    def _diag_tile():
        # Only on-diagonal tiles carry the -10/T self-similarity mask.
        r = lax.broadcasted_iota(jnp.int32, s.shape, 0)
        c = lax.broadcasted_iota(jnp.int32, s.shape, 1)
        _online_update(jnp.where(r == c, mask_val, s))

    @pl.when(qi != ki)
    def _offdiag_tile():
        _online_update(s)

    @pl.when(ki == nk - 1)
    def _finalize():
        # CrossEntropy(target=0, reduction='none') = logsumexp(out) - out[:, 0]
        loss = m_ref[...] + jnp.log(l_ref[...]) - pos_ref[...].reshape(m_ref.shape)
        loss_ref[...] = loss.reshape(loss_ref.shape).astype(loss_ref.dtype)


def patchnce_loss2(feat_q, feat_k, *, nce_t=0.07, batch_size=2,
                   nce_includes_all_negatives_from_minibatch=False,
                   tile=None, matmul_dtype=jnp.bfloat16, exp_dtype=None,
                   k_resident_max_bytes=8 * 1024 * 1024):
    """Pallas TPU implementation of PatchNCELoss2.forward.

    feat_q, feat_k: (num_patches_total, dim). Returns (num_patches_total,) f32.
    matmul_dtype: MXU operand dtype for the NxN logits (bf16 = native
      single-pass MXU with f32 accumulation; jnp.float32 = exact fp32 logits).
    """
    total, dim = feat_q.shape
    bdim = 1 if nce_includes_all_negatives_from_minibatch else batch_size
    if total % bdim != 0:
        raise ValueError(
            f"num_patches_total={total} not divisible by bmm batch dim {bdim}")
    npatches = total // bdim
    inv_t = float(1.0 / nce_t)

    feat_kd = lax.stop_gradient(feat_k)                # .detach()
    fq32 = feat_q.astype(jnp.float32)
    fk32 = feat_kd.astype(jnp.float32)

    # Exact f32 positive logit (class 0), already /T. O(total*dim), one XLA op.
    l_pos = (jnp.sum(fq32 * fk32, axis=1) * inv_t).reshape(bdim, npatches)

    if tile is None:
        tile, n_pad = _choose_tiling(npatches)
    else:
        n_pad = _round_up(npatches, tile)
        if n_pad // tile > 1 and tile % 8 != 0:
            raise ValueError(f"tile={tile} must be a multiple of 8 when tiling")
    nq = n_pad // tile

    # Fold 1/T into q (fuses with the dtype cast); store both MXU operands in
    # matmul_dtype in HBM -> half the K-stream bytes for the bf16 path.
    q = (fq32 * inv_t).astype(matmul_dtype).reshape(bdim, npatches, dim)
    k = fk32.astype(matmul_dtype).reshape(bdim, npatches, dim)
    if n_pad != npatches:
        pad = n_pad - npatches
        q = jnp.pad(q, ((0, 0), (0, pad), (0, 0)))
        k = jnp.pad(k, ((0, 0), (0, pad), (0, 0)))
        l_pos = jnp.pad(l_pos, ((0, 0), (0, pad)))
    l_pos = l_pos.reshape(bdim, nq, 1, tile)

    if exp_dtype is None:
        exp_dtype = _default_exp_dtype(matmul_dtype)

    itemsize = jnp.dtype(matmul_dtype).itemsize
    slab_bytes = n_pad * dim * itemsize
    k_resident = slab_bytes <= k_resident_max_bytes
    if k_resident:
        # Whole per-batch K slab resident in VMEM: block index constant across
        # qi/ki -> a single DMA per batch instead of one per (batch, q-tile).
        k_spec = pl.BlockSpec((1, n_pad, dim), lambda b, qi, ki: (b, 0, 0))
    else:
        k_spec = pl.BlockSpec((1, tile, dim), lambda b, qi, ki: (b, ki, 0))

    kernel = functools.partial(
        _patchnce_kernel, tile=tile, n_valid=npatches,
        padded=(n_pad != npatches), mask_val=float(-10.0 * inv_t),
        exp_dtype=exp_dtype, k_resident=k_resident)

    k_hbm_bytes = bdim * (slab_bytes if k_resident else nq * slab_bytes)
    cost = pl.CostEstimate(
        flops=2 * bdim * n_pad * n_pad * dim + 2 * bdim * n_pad * n_pad,
        transcendentals=bdim * n_pad * (n_pad + 2 * nq),
        bytes_accessed=int(itemsize * bdim * n_pad * dim        # q
                           + k_hbm_bytes                        # k
                           + 4 * bdim * n_pad * 2))             # pos in + loss out

    k_block_bytes = (n_pad if k_resident else tile) * dim * itemsize
    vmem_est = (2 * k_block_bytes + 2 * tile * dim * itemsize
                + 3 * tile * tile * 4 + 8 * tile * 4)
    vmem_limit = int(min(56 * 2 ** 20, max(32 * 2 ** 20, 1.3 * vmem_est)))

    loss = pl.pallas_call(
        kernel,
        out_shape=jax.ShapeDtypeStruct((bdim, nq, 1, tile), jnp.float32),
        grid_spec=pltpu.PrefetchScalarGridSpec(
            num_scalar_prefetch=0,
            grid=(bdim, nq, nq),                                # key-tile axis innermost
            in_specs=[
                pl.BlockSpec((1, 1, 1, tile), lambda b, qi, ki: (b, qi, 0, 0)),  # l_pos
                pl.BlockSpec((1, tile, dim), lambda b, qi, ki: (b, qi, 0)),      # q tile
                k_spec,                                                          # k slab/tile
            ],
            out_specs=pl.BlockSpec((1, 1, 1, tile),
                                   lambda b, qi, ki: (b, qi, 0, 0)),
            scratch_shapes=[pltpu.VMEM((1, tile), jnp.float32),   # running max
                            pltpu.VMEM((1, tile), jnp.float32)]), # running sum
        compiler_params=pltpu.CompilerParams(
            # TODO(synk): on v7x confirm in xprof that the grid splits across
            # both TensorCores; if not, mark the batch axis CORE_PARALLEL.
            dimension_semantics=("parallel", "parallel", "arbitrary"),
            vmem_limit_bytes=vmem_limit),
        cost_estimate=cost,
    )(l_pos, q, k)

    # TODO(synk): forward-only; training use needs an explicit custom_vjp.
    return loss.reshape(bdim, n_pad)[:, :npatches].reshape(total)


def _reference(feat_q, feat_k, *, nce_t=0.07, batch_size=2,
               nce_includes_all_negatives_from_minibatch=False):
    total, dim = feat_q.shape
    bdim = 1 if nce_includes_all_negatives_from_minibatch else batch_size
    npatches = total // bdim
    l_pos = jnp.sum(feat_q * feat_k, axis=1, keepdims=True)          # (total,1)
    q = feat_q.reshape(bdim, npatches, dim)
    k = feat_k.reshape(bdim, npatches, dim)
    l_neg = jnp.einsum('bpd,bqd->bpq', q, k, precision=lax.Precision.HIGHEST)
    eye = jnp.eye(npatches, dtype=bool)[None]
    l_neg = jnp.where(eye, -10.0, l_neg).reshape(total, npatches)
    out = jnp.concatenate([l_pos, l_neg], axis=1) / nce_t
    return jax.nn.logsumexp(out, axis=1) - out[:, 0]


if __name__ == "__main__":
    batch_size = 2
    dim = 32
    nce_t = 0.07
    key = jax.random.PRNGKey(0)

    # --- Test 1: single-tile path (8 patches / image), exact fp32 MXU ---
    total = batch_size * 8
    k1, k2, key = jax.random.split(key, 3)
    fq = jax.random.normal(k1, (total, dim), dtype=jnp.float32)
    fk = jax.random.normal(k2, (total, dim), dtype=jnp.float32)
    loss = jax.block_until_ready(
        patchnce_loss2(fq, fk, nce_t=nce_t, batch_size=batch_size,
                       matmul_dtype=jnp.float32))
    ref = _reference(fq, fk, nce_t=nce_t, batch_size=batch_size)
    assert loss.shape == (total,)
    assert jnp.allclose(loss, ref, rtol=1e-4, atol=1e-3), (loss, ref)

    # --- Test 2: multi-tile online-logsumexp + resident-K slab slicing ---
    total = batch_size * 16
    npatches = total // batch_size
    k1, k2, key = jax.random.split(key, 3)
    fq = jax.random.normal(k1, (total, dim), dtype=jnp.float32)
    fk = jax.random.normal(k2, (total, dim), dtype=jnp.float32)
    loss = jax.block_until_ready(
        patchnce_loss2(fq, fk, nce_t=nce_t, batch_size=batch_size,
                       tile=8, matmul_dtype=jnp.float32))
    ref = _reference(fq, fk, nce_t=nce_t, batch_size=batch_size)
    assert jnp.allclose(loss, ref, rtol=1e-4, atol=1e-3), (loss, ref)

    # --- Test 2b: K per-tile streaming fallback (resident slab disabled) ---
    loss_stream = jax.block_until_ready(
        patchnce_loss2(fq, fk, nce_t=nce_t, batch_size=batch_size,
                       tile=8, matmul_dtype=jnp.float32,
                       k_resident_max_bytes=0))
    assert jnp.allclose(loss_stream, ref, rtol=1e-4, atol=1e-3), (loss_stream, ref)

    # --- Test 3: default bf16-MXU path vs bf16-rounded reference (f32 l_pos) ---
    loss_bf16 = jax.block_until_ready(
        patchnce_loss2(fq, fk, nce_t=nce_t, batch_size=batch_size, tile=8))
    inv_t = jnp.float32(1.0 / nce_t)
    qs = (fq * inv_t).astype(jnp.bfloat16).astype(jnp.float32)
    kr = fk.astype(jnp.bfloat16).astype(jnp.float32)
    qs3 = qs.reshape(batch_size, npatches, dim)
    kr3 = kr.reshape(batch_size, npatches, dim)
    pos = (jnp.sum(fq * fk, axis=1) * inv_t).reshape(batch_size, npatches, 1)
    neg = jnp.einsum('bpd,bqd->bpq', qs3, kr3, precision=lax.Precision.HIGHEST)
    neg = jnp.where(jnp.eye(npatches, dtype=bool)[None], -10.0 * inv_t, neg)
    out = jnp.concatenate([pos, neg], axis=-1).reshape(total, npatches + 1)
    ref_bf16 = jax.nn.logsumexp(out, axis=1) - out[:, 0]
    assert jnp.allclose(loss_bf16, ref_bf16, rtol=2e-3, atol=3e-2), (
        loss_bf16, ref_bf16)

    # --- Test 4: non-aligned npatches (12 -> pad 16), single tile, masked keys ---
    total = batch_size * 12
    k1, k2, key = jax.random.split(key, 3)
    fq = jax.random.normal(k1, (total, dim), dtype=jnp.float32)
    fk = jax.random.normal(k2, (total, dim), dtype=jnp.float32)
    ref = _reference(fq, fk, nce_t=nce_t, batch_size=batch_size)
    loss = jax.block_until_ready(
        patchnce_loss2(fq, fk, nce_t=nce_t, batch_size=batch_size,
                       matmul_dtype=jnp.float32))
    assert loss.shape == (total,)
    assert jnp.allclose(loss, ref, rtol=1e-4, atol=1e-3), (loss, ref)

    # --- Test 5: padded + multi-tile (12 -> 16, tile=8) ---
    loss = jax.block_until_ready(
        patchnce_loss2(fq, fk, nce_t=nce_t, batch_size=batch_size,
                       tile=8, matmul_dtype=jnp.float32))
    assert jnp.allclose(loss, ref, rtol=1e-4, atol=1e-3), (loss, ref)

    print("KERNEL_OK")
</pallas_src>

<mosaic_0001>
module attributes {stable_mosaic.version = 11 : i64} {
  func.func @_patchnce_kernel(%arg0: i32, %arg1: i32, %arg2: i32, %arg3: memref<1x1x1x8xf32, #tpu.memory_space<vmem>>, %arg4: memref<1x8x32xf32, #tpu.memory_space<vmem>>, %arg5: memref<1x8x32xf32, #tpu.memory_space<vmem>>, %arg6: memref<1x1x1x8xf32, #tpu.memory_space<vmem>>, %arg7: memref<1x8xf32, #tpu.memory_space<vmem>>, %arg8: memref<1x8xf32, #tpu.memory_space<vmem>>) attributes {dimension_semantics = [#tpu.dimension_semantics<parallel>, #tpu.dimension_semantics<parallel>, #tpu.dimension_semantics<arbitrary>], iteration_bounds = array<i64: 2, 1, 1>, scalar_prefetch = 0 : i64, scratch_operands = 2 : i64, tpu.core_type = #tpu.core_type<tc>, window_params = [{transform_indices = @transform_0, window_bounds = array<i64: 1, 1, 1, 8>}, {transform_indices = @transform_1, window_bounds = array<i64: 1, 8, 32>}, {transform_indices = @transform_2, window_bounds = array<i64: 1, 8, 32>}, {transform_indices = @transform_3, window_bounds = array<i64: 1, 1, 1, 8>}]} {
    %c0_i32 = arith.constant 0 : i32
    %0 = arith.cmpi eq, %arg2, %c0_i32 : i32
    %1 = arith.extui %0 : i1 to i32
    %c0_i32_0 = arith.constant 0 : i32
    %2 = arith.cmpi ne, %1, %c0_i32_0 : i32
    scf.if %2 {
      %c0_9 = arith.constant 0 : index
      %c0_10 = arith.constant 0 : index
      %c0_11 = arith.constant 0 : index
      %c0_12 = arith.constant 0 : index
      %20 = vector.load %arg3[%c0_9, %c0_10, %c0_11, %c0_12] : memref<1x1x1x8xf32, #tpu.memory_space<vmem>>, vector<1x1x1x8xf32>
      %21 = vector.shape_cast %20 : vector<1x1x1x8xf32> to vector<1x8xf32>
      %c0_13 = arith.constant 0 : index
      %c0_14 = arith.constant 0 : index
      %22 = vector.load %arg7[%c0_13, %c0_14] : memref<1x8xf32, #tpu.memory_space<vmem>>, vector<1x8xf32>
      tpu.vector_store %arg7[%c0_13, %c0_14], %21 {strides = array<i32>} : memref<1x8xf32, #tpu.memory_space<vmem>>, vector<1x8xf32>,
      %cst_15 = arith.constant 1.000000e+00 : f32
      %23 = vector.broadcast %cst_15 : f32 to vector<1x8xf32>
      %c0_16 = arith.constant 0 : index
      %c0_17 = arith.constant 0 : index
      %24 = vector.load %arg8[%c0_16, %c0_17] : memref<1x8xf32, #tpu.memory_space<vmem>>, vector<1x8xf32>
      tpu.vector_store %arg8[%c0_16, %c0_17], %23 {strides = array<i32>} : memref<1x8xf32, #tpu.memory_space<vmem>>, vector<1x8xf32>,
    } else {
    }
    %c0 = arith.constant 0 : index
    %c0_1 = arith.constant 0 : index
    %c0_2 = arith.constant 0 : index
    %3 = vector.load %arg4[%c0, %c0_1, %c0_2] : memref<1x8x32xf32, #tpu.memory_space<vmem>>, vector<1x8x32xf32>
    %4 = vector.shape_cast %3 : vector<1x8x32xf32> to vector<8x32xf32>
    %c8_i32 = arith.constant 8 : i32
    %5 = arith.muli %arg2, %c8_i32 : i32
    %6 = tpu.assume_multiple %5, 8 : i32
    %c0_3 = arith.constant 0 : index
    %7 = arith.index_cast %6 : i32 to index
    %c0_4 = arith.constant 0 : index
    %8 = vector.load %arg5[%c0_3, %7, %c0_4] : memref<1x8x32xf32, #tpu.memory_space<vmem>>, vector<1x8x32xf32>
    %9 = vector.shape_cast %8 : vector<1x8x32xf32> to vector<8x32xf32>
    %cst = arith.constant dense<0.000000e+00> : vector<8x8xf32>
    %10 = tpu.matmul %9, %4, %cst {dimension_numbers = #tpu.dot_dimension_numbers<[1], [1], [0], [0], [0, 0, 1, 0], [], []>} : vector<8x32xf32>, vector<8x32xf32>, vector<8x8xf32> -> vector<8x8xf32>
    %11 = arith.cmpi eq, %arg1, %arg2 : i32
    %12 = arith.extui %11 : i1 to i32
    %c0_i32_5 = arith.constant 0 : i32
    %13 = arith.cmpi ne, %12, %c0_i32_5 : i32
    scf.if %13 {
      %20 = tpu.iota {dimensions = array<i32: 0>} : vector<8x8xi32>
      %21 = tpu.iota {dimensions = array<i32: 1>} : vector<8x8xi32>
      %22 = arith.cmpi eq, %20, %21 : vector<8x8xi32>
      %cst_9 = arith.constant -142.857147 : f32
      %23 = vector.broadcast %cst_9 : f32 to vector<8x8xf32>
      %24 = arith.select %22, %23, %10 : vector<8x8xi1>, vector<8x8xf32>
      %c0_10 = arith.constant 0 : index
      %c0_11 = arith.constant 0 : index
      %25 = vector.load %arg7[%c0_10, %c0_11] : memref<1x8xf32, #tpu.memory_space<vmem>>, vector<1x8xf32>
      %c0_12 = arith.constant 0 : index
      %c0_13 = arith.constant 0 : index
      %26 = vector.load %arg8[%c0_12, %c0_13] : memref<1x8xf32, #tpu.memory_space<vmem>>, vector<1x8xf32>
      %cst_14 = arith.constant dense<0xFF800000> : vector<8xf32>
      %27 = vector.multi_reduction <maximumf>, %24, %cst_14 [0] : vector<8x8xf32> to vector<8xf32>
      %28 = vector.shape_cast %27 : vector<8xf32> to vector<1x8xf32>
      %29 = arith.maximumf %25, %28 : vector<1x8xf32>
      %30 = vector.broadcast %29 : vector<1x8xf32> to vector<8x8xf32>
      %31 = arith.subf %24, %30 : vector<8x8xf32>
      %32 = math.exp %31 : vector<8x8xf32>
      %cst_15 = arith.constant dense<0.000000e+00> : vector<8xf32>
      %33 = vector.multi_reduction <add>, %32, %cst_15 [0] : vector<8x8xf32> to vector<8xf32>
      %34 = vector.shape_cast %33 : vector<8xf32> to vector<1x8xf32>
      %35 = arith.subf %25, %29 : vector<1x8xf32>
      %36 = math.exp %35 : vector<1x8xf32>
      %37 = arith.mulf %36, %26 : vector<1x8xf32>
      %38 = arith.addf %37, %34 : vector<1x8xf32>
      %c0_16 = arith.constant 0 : index
      %c0_17 = arith.constant 0 : index
      %39 = vector.load %arg8[%c0_16, %c0_17] : memref<1x8xf32, #tpu.memory_space<vmem>>, vector<1x8xf32>
      tpu.vector_store %arg8[%c0_16, %c0_17], %38 {strides = array<i32>} : memref<1x8xf32, #tpu.memory_space<vmem>>, vector<1x8xf32>,
      %c0_18 = arith.constant 0 : index
      %c0_19 = arith.constant 0 : index
      %40 = vector.load %arg7[%c0_18, %c0_19] : memref<1x8xf32, #tpu.memory_space<vmem>>, vector<1x8xf32>
      tpu.vector_store %arg7[%c0_18, %c0_19], %29 {strides = array<i32>} : memref<1x8xf32, #tpu.memory_space<vmem>>, vector<1x8xf32>,
    } else {
    }
    %14 = arith.cmpi ne, %arg1, %arg2 : i32
    %15 = arith.extui %14 : i1 to i32
    %c0_i32_6 = arith.constant 0 : i32
    %16 = arith.cmpi ne, %15, %c0_i32_6 : i32
    scf.if %16 {
      %c0_9 = arith.constant 0 : index
      %c0_10 = arith.constant 0 : index
      %20 = vector.load %arg7[%c0_9, %c0_10] : memref<1x8xf32, #tpu.memory_space<vmem>>, vector<1x8xf32>
      %c0_11 = arith.constant 0 : index
      %c0_12 = arith.constant 0 : index
      %21 = vector.load %arg8[%c0_11, %c0_12] : memref<1x8xf32, #tpu.memory_space<vmem>>, vector<1x8xf32>
      %cst_13 = arith.constant dense<0xFF800000> : vector<8xf32>
      %22 = vector.multi_reduction <maximumf>, %10, %cst_13 [0] : vector<8x8xf32> to vector<8xf32>
      %23 = vector.shape_cast %22 : vector<8xf32> to vector<1x8xf32>
      %24 = arith.maximumf %20, %23 : vector<1x8xf32>
      %25 = vector.broadcast %24 : vector<1x8xf32> to vector<8x8xf32>
      %26 = arith.subf %10, %25 : vector<8x8xf32>
      %27 = math.exp %26 : vector<8x8xf32>
      %cst_14 = arith.constant dense<0.000000e+00> : vector<8xf32>
      %28 = vector.multi_reduction <add>, %27, %cst_14 [0] : vector<8x8xf32> to vector<8xf32>
      %29 = vector.shape_cast %28 : vector<8xf32> to vector<1x8xf32>
      %30 = arith.subf %20, %24 : vector<1x8xf32>
      %31 = math.exp %30 : vector<1x8xf32>
      %32 = arith.mulf %31, %21 : vector<1x8xf32>
      %33 = arith.addf %32, %29 : vector<1x8xf32>
      %c0_15 = arith.constant 0 : index
      %c0_16 = arith.constant 0 : index
      %34 = vector.load %arg8[%c0_15, %c0_16] : memref<1x8xf32, #tpu.memory_space<vmem>>, vector<1x8xf32>
      tpu.vector_store %arg8[%c0_15, %c0_16], %33 {strides = array<i32>} : memref<1x8xf32, #tpu.memory_space<vmem>>, vector<1x8xf32>,
      %c0_17 = arith.constant 0 : index
      %c0_18 = arith.constant 0 : index
      %35 = vector.load %arg7[%c0_17, %c0_18] : memref<1x8xf32, #tpu.memory_space<vmem>>, vector<1x8xf32>
      tpu.vector_store %arg7[%c0_17, %c0_18], %24 {strides = array<i32>} : memref<1x8xf32, #tpu.memory_space<vmem>>, vector<1x8xf32>,
    } else {
    }
    %c0_i32_7 = arith.constant 0 : i32
    %17 = arith.cmpi eq, %arg2, %c0_i32_7 : i32
    %18 = arith.extui %17 : i1 to i32
    %c0_i32_8 = arith.constant 0 : i32
    %19 = arith.cmpi ne, %18, %c0_i32_8 : i32
    scf.if %19 {
      %c0_9 = arith.constant 0 : index
      %c0_10 = arith.constant 0 : index
      %20 = vector.load %arg7[%c0_9, %c0_10] : memref<1x8xf32, #tpu.memory_space<vmem>>, vector<1x8xf32>
      %c0_11 = arith.constant 0 : index
      %c0_12 = arith.constant 0 : index
      %21 = vector.load %arg8[%c0_11, %c0_12] : memref<1x8xf32, #tpu.memory_space<vmem>>, vector<1x8xf32>
      %22 = math.log %21 : vector<1x8xf32>
      %23 = arith.addf %20, %22 : vector<1x8xf32>
      %c0_13 = arith.constant 0 : index
      %c0_14 = arith.constant 0 : index
      %c0_15 = arith.constant 0 : index
      %c0_16 = arith.constant 0 : index
      %24 = vector.load %arg3[%c0_13, %c0_14, %c0_15, %c0_16] : memref<1x1x1x8xf32, #tpu.memory_space<vmem>>, vector<1x1x1x8xf32>
      %25 = vector.shape_cast %24 : vector<1x1x1x8xf32> to vector<1x8xf32>
      %26 = arith.subf %23, %25 : vector<1x8xf32>
      %27 = vector.shape_cast %26 : vector<1x8xf32> to vector<1x1x1x8xf32>
      %c0_17 = arith.constant 0 : index
      %c0_18 = arith.constant 0 : index
      %c0_19 = arith.constant 0 : index
      %c0_20 = arith.constant 0 : index
      %28 = vector.load %arg6[%c0_17, %c0_18, %c0_19, %c0_20] : memref<1x1x1x8xf32, #tpu.memory_space<vmem>>, vector<1x1x1x8xf32>
      tpu.vector_store %arg6[%c0_17, %c0_18, %c0_19, %c0_20], %27 {strides = array<i32>} : memref<1x1x1x8xf32, #tpu.memory_space<vmem>>, vector<1x1x1x8xf32>,
    } else {
    }
    return
  }
  func.func @transform_0(%arg0: i32, %arg1: i32, %arg2: i32) -> (i32, i32, i32, i32) {
    %c0_i32 = arith.constant 0 : i32
    %c0_i32_0 = arith.constant 0 : i32
    %c0_i32_1 = arith.constant 0 : i32
    return %arg0, %arg1, %c0_i32, %c0_i32_0 : i32, i32, i32, i32
  }
  func.func @transform_1(%arg0: i32, %arg1: i32, %arg2: i32) -> (i32, i32, i32) {
    %c0_i32 = arith.constant 0 : i32
    %c0_i32_0 = arith.constant 0 : i32
    return %arg0, %arg1, %c0_i32 : i32, i32, i32
  }
  func.func @transform_2(%arg0: i32, %arg1: i32, %arg2: i32) -> (i32, i32, i32) {
    %c0_i32 = arith.constant 0 : i32
    %c0_i32_0 = arith.constant 0 : i32
    %c0_i32_1 = arith.constant 0 : i32
    return %arg0, %c0_i32, %c0_i32_0 : i32, i32, i32
  }
  func.func @transform_3(%arg0: i32, %arg1: i32, %arg2: i32) -> (i32, i32, i32, i32) {
    %c0_i32 = arith.constant 0 : i32
    %c0_i32_0 = arith.constant 0 : i32
    %c0_i32_1 = arith.constant 0 : i32
    return %arg0, %arg1, %c0_i32, %c0_i32_0 : i32, i32, i32, i32
  }
}

</mosaic_0001>

<llo_original>
// kernel: tpu_custom_call.1
$region0: #{tpu_custom_call.1}
  #allocation0 [shape = 'u32[]', space=smem, size = 0x4, offset = 0x4, fixed_abs, tag = 'smem constant byte address 0x4 - core index']
  #allocation1 [shape = 'u32[144,128]{1,0:T(1,128)}', space=vmem, size = 0x12000, scoped, tag = 'internal scratch']
  #allocation2 [shape = 'f32[1,8]{1,0:T(1,128)}', space=vmem, size = 0x200, scoped, tag = 'scratch operand']
  #allocation3 [shape = 'f32[1,8]{1,0:T(1,128)}', space=vmem, size = 0x200, scoped, tag = 'scratch operand']
  %s0 = inlined_call_operand.hbm [shape: f32[2,1,1,8], index: 0, kind: input, shape index: {}]
  %s1 = inlined_call_operand.hbm [shape: f32[2,8,32], index: 1, kind: input, shape index: {}]
  %s2 = inlined_call_operand.hbm [shape: f32[2,8,32], index: 2, kind: input, shape index: {}]
  %s3 = inlined_call_operand.hbm [shape: f32[2,1,1,8], index: 3, kind: output, shape index: {}]
  %s4 = sld [smem:[#allocation0]]
  $region73: #{tpu_custom_call.1} parent=0
    _
  %s6 = ssub.s32 1, %s4
  %s7 = scalar_select 0, %s6, %s4
  $region1: #{tpu_custom_call.1} parent=0
    #allocation4 [shape = 'u8[1024]{0}', space=vmem, size = 0x400, scoped, tag = 'input window, operand 0']
    #allocation5 [shape = 's32[2]{0}', space=sflag, size = 0x8, scoped, tag = 'scoped memory for tpu_custom_call.1']
    #allocation6 [shape = 's32[2]{0}', space=sflag, size = 0x8, scoped, tag = 'scoped memory for tpu_custom_call.1']
    #allocation7 [shape = 'u8[8192]{0}', space=vmem, size = 0x2000, scoped, tag = 'input window, operand 1']
    #allocation8 [shape = 's32[2]{0}', space=sflag, size = 0x8, scoped, tag = 'scoped memory for tpu_custom_call.1']
    #allocation9 [shape = 'u8[8192]{0}', space=vmem, size = 0x2000, scoped, tag = 'input window, operand 2']
    #allocation10 [shape = 'u8[1024]{0}', space=vmem, size = 0x400, scoped, tag = 'output window, operand 0']
    %8 = vsyncpa [#allocation5], 0
    %s9 = scalar_lea.sflag [#allocation5], 1
    %10 = vsyncpa %s9, 0
    %11 = vsyncpa [#allocation8], 0
    %s12 = scalar_lea.sflag [#allocation8], 1
    %13 = vsyncpa %s12, 0
    %14 = vsyncpa [#allocation6], 0
    %s15 = scalar_lea.sflag [#allocation6], 1
    %16 = vsyncpa %s15, 0
    loop: start=0, step=1, limit=4
    $region2: #{tpu_custom_call.1} parent=1 // loop_pre_header
      _
    $region3: #{tpu_custom_call.1} parent=1 // loop_header
      %s18 = sphi 0, %s22
      %p19 = scmp.ge.s32.totalorder %s18, 4
      %s25 = sphi 0, %s44
      %s26 = sphi 0, %s40
      %s27 = sphi 0, %s36
      %s28 = sphi 0, %s25
      %s29 = sphi 0, %s26
      %s30 = sphi 0, %s27
      %s31 = sphi 0, %s28
      %s32 = sphi 0, %s29
      %s33 = sphi 0, %s30
      %s49 = sphi 0, %s51
      %s52 = sphi 0, %s49
      %s53 = sphi 0, %s52
      %s69 = sphi 0, %s53
      %s77 = sphi 0, %s79
      %s80 = sphi 0, %s77
      %s81 = sphi 0, %s80
      %s97 = sphi 0, %s81
      %s103 = sphi 0, %s105
      %s106 = sphi 0, %s103
      %s107 = sphi 0, %s106
      %s123 = sphi 0, %s107
      %s131 = sphi 0, %s133
      %s134 = sphi 0, %s131
      %s135 = sphi 0, %s134
      %s151 = sphi 0, %s135
    $region4: #{tpu_custom_call.1} parent=1 // loop_header_branch
      %21 = sbr.rel (%p19) target = $region8
    $region5: #{tpu_custom_call.1} parent=1 // loop_body
      %s23 = ssub.s32 %s18, 1
      %s24 = ssub.s32 %s18, 2
      %s34 = sadd.s32 1, %s27
      %p35 = scmp.ge.s32.totalorder %s34, 1
      %s36 = scalar_select %p35, 0, %s34
      %s37 = sadd.s32 1, %s26
      %s38 = scalar_select %p35, %s37, %s26
      %p39 = scmp.ge.s32.totalorder %s38, 1
      %s40 = scalar_select %p39, 0, %s38
      %s41 = sadd.s32 1, %s25
      %s42 = scalar_select %p39, %s41, %s25
      %p43 = scmp.ge.s32.totalorder %s42, 2
      %s44 = scalar_select %p43, 0, %s42
      %s45 = ssub.s32 %s25, %s44
      %s46 = ssub.s32 %s26, %s40
      %s47 = sor.u32 %s45, %s46
      %p48 = scmp.eq.s32.totalorder %s47, 0
      %s50 = sadd.s32 %s49, 1
      %s51 = scalar_select %p48, %s49, %s50
      %p54 = pneg %p48
      %p55 = scmp.eq.s32.totalorder %s18, 1
      %p56 = por %p54, %p55
      %p57 = scmp.ne.s32.totalorder %s49, %s52
      %p58 = scmp.eq.s32.totalorder %s18, 0
      %p59 = por %p57, %p58
      %p60 = scmp.ne.s32.totalorder %s49, %s52
      %p61 = scmp.eq.s32.totalorder %s23, 1
      %p62 = por %p60, %p61
      %p63 = scmp.ne.s32.totalorder %s52, %s53
      %p64 = scmp.eq.s32.totalorder %s23, 0
      %p65 = por %p63, %p64
      %p66 = scmp.ne.s32.totalorder %s52, %s53
      %p67 = scmp.eq.s32.totalorder %s24, 1
      %p68 = por %p66, %p67
      %p70 = scmp.ne.s32.totalorder %s53, %s69
      %p71 = scmp.eq.s32.totalorder %s24, 0
      %p72 = por %p70, %p71
      %s73 = ssub.s32 %s25, %s44
      %s74 = ssub.s32 %s26, %s40
      %s75 = sor.u32 %s73, %s74
      %p76 = scmp.eq.s32.totalorder %s75, 0
      %s78 = sadd.s32 %s77, 1
      %s79 = scalar_select %p76, %s77, %s78
      %p82 = pneg %p76
      %p83 = scmp.eq.s32.totalorder %s18, 1
      %p84 = por %p82, %p83
      %p85 = scmp.ne.s32.totalorder %s77, %s80
      %p86 = scmp.eq.s32.totalorder %s18, 0
      %p87 = por %p85, %p86
      %p88 = scmp.ne.s32.totalorder %s77, %s80
      %p89 = scmp.eq.s32.totalorder %s23, 1
      %p90 = por %p88, %p89
      %p91 = scmp.ne.s32.totalorder %s80, %s81
      %p92 = scmp.eq.s32.totalorder %s23, 0
      %p93 = por %p91, %p92
      %p94 = scmp.ne.s32.totalorder %s80, %s81
      %p95 = scmp.eq.s32.totalorder %s24, 1
      %p96 = por %p94, %p95
      %p98 = scmp.ne.s32.totalorder %s81, %s97
      %p99 = scmp.eq.s32.totalorder %s24, 0
      %p100 = por %p98, %p99
      %s101 = ssub.s32 %s25, %s44
      %p102 = scmp.eq.s32.totalorder %s101, 0
      %s104 = sadd.s32 %s103, 1
      %s105 = scalar_select %p102, %s103, %s104
      %p108 = pneg %p102
      %p109 = scmp.eq.s32.totalorder %s18, 1
      %p110 = por %p108, %p109
      %p111 = scmp.ne.s32.totalorder %s103, %s106
      %p112 = scmp.eq.s32.totalorder %s18, 0
      %p113 = por %p111, %p112
      %p114 = scmp.ne.s32.totalorder %s103, %s106
      %p115 = scmp.eq.s32.totalorder %s23, 1
      %p116 = por %p114, %p115
      %p117 = scmp.ne.s32.totalorder %s106, %s107
      %p118 = scmp.eq.s32.totalorder %s23, 0
      %p119 = por %p117, %p118
      %p120 = scmp.ne.s32.totalorder %s106, %s107
      %p121 = scmp.eq.s32.totalorder %s24, 1
      %p122 = por %p120, %p121
      %p124 = scmp.ne.s32.totalorder %s107, %s123
      %p125 = scmp.eq.s32.totalorder %s24, 0
      %p126 = por %p124, %p125
      %s127 = ssub.s32 %s25, %s44
      %s128 = ssub.s32 %s26, %s40
      %s129 = sor.u32 %s127, %s128
      %p130 = scmp.eq.s32.totalorder %s129, 0
      %s132 = sadd.s32 %s131, 1
      %s133 = scalar_select %p130, %s131, %s132
      %p136 = pneg %p130
      %p137 = scmp.eq.s32.totalorder %s18, 1
      %p138 = por %p136, %p137
      %p139 = scmp.ne.s32.totalorder %s131, %s134
      %p140 = scmp.eq.s32.totalorder %s18, 0
      %p141 = por %p139, %p140
      %p142 = scmp.ne.s32.totalorder %s131, %s134
      %p143 = scmp.eq.s32.totalorder %s23, 1
      %p144 = por %p142, %p143
      %p145 = scmp.ne.s32.totalorder %s134, %s135
      %p146 = scmp.eq.s32.totalorder %s23, 0
      %p147 = por %p145, %p146
      %p148 = scmp.ne.s32.totalorder %s134, %s135
      %p149 = scmp.eq.s32.totalorder %s24, 1
      %p150 = por %p148, %p149
      %p152 = scmp.ne.s32.totalorder %s135, %s151
      %p153 = scmp.eq.s32.totalorder %s24, 0
      %p154 = por %p152, %p153
      %p155 = scmp.le.s32.totalorder 1, %s18
      %p156 = scmp.lt.s32.totalorder %s18, 3
      %p157 = pnand %p155, %p156
      %p158 = pneg %p157
      // Predicated region
      $region9: #{tpu_custom_call.1} parent=5 // pred_check
        _
      $region10: #{tpu_custom_call.1} parent=5 // pred_check_branch
        %160 = sbr.rel (%p157) target = $region12
      $region11: #{tpu_custom_call.1} parent=5 // pred_region
        %s161 = ssub.s32 %s18, 1
      $region12: #{tpu_custom_call.1} parent=5 // pred_fallthru
        _
      %p162 = scmp.lt.s32.totalorder %s18, 2
      // Predicated region
      $region13: #{tpu_custom_call.1} parent=5 // pred_check
        %p163 = pneg %p162
      $region14: #{tpu_custom_call.1} parent=5 // pred_check_branch
        %165 = sbr.rel (%p163) target = $region16
      $region15: #{tpu_custom_call.1} parent=5 // pred_region
        // Predicated region
        $region17: #{tpu_custom_call.1} parent=15 // pred_check
          %p166 = pneg %p59
        $region18: #{tpu_custom_call.1} parent=15 // pred_check_branch
          %168 = sbr.rel (%p166) target = $region20
        $region19: #{tpu_custom_call.1} parent=15 // pred_region
          %s169 = sand.u32 %s49, 1
          %s170 = scalar_lea.sflag [#allocation5], %s169
          %s171 = sand.u32 %s49, 1
          %s172 = scalar_lea.vmem [#allocation4], %s171
          %s174 = ssub.s32 16, 16
          %175 = vsyncadd %s170, %s174
          %s176 = sadd.s32 %s26, %s25
          %s177 = smul.addr %s176, 16
          %s178 = scalar_lea.hbm %s0, %s177
          %s180 = sshll.u32 %s172, 4
          %s181 = int_to_ptr.vmem [resolvable:$true] %s180
          %183 = dma.hbm_to_vmem [thread:$0]  %s178, 16, %s181, %s170
        $region20: #{tpu_custom_call.1} parent=15 // pred_fallthru
          _
        // Predicated region
        $region21: #{tpu_custom_call.1} parent=15 // pred_check
          %p184 = pneg %p87
        $region22: #{tpu_custom_call.1} parent=15 // pred_check_branch
          %186 = sbr.rel (%p184) target = $region24
        $region23: #{tpu_custom_call.1} parent=15 // pred_region
          %s187 = sand.u32 %s18, 1
          %s188 = scalar_lea.sflag [#allocation8], %s187
          %s189 = sand.u32 %s77, 1
          %s190 = smul.addr %s189, 8
          %s191 = scalar_lea.vmem [#allocation7], %s190
          %s193 = ssub.s32 128, 128
          %194 = vsyncadd %s188, %s193
          %s195 = sadd.s32 %s26, %s25
          %s196 = smul.addr %s195, 128
          %s197 = scalar_lea.hbm %s1, %s196
          %s199 = sshll.u32 %s191, 4
          %s200 = int_to_ptr.vmem [resolvable:$true] %s199
          %202 = dma.hbm_to_vmem [thread:$0]  %s197, 128, %s200, %s188
        $region24: #{tpu_custom_call.1} parent=15 // pred_fallthru
          _
        // Predicated region
        $region25: #{tpu_custom_call.1} parent=15 // pred_check
          %p203 = pneg %p113
        $region26: #{tpu_custom_call.1} parent=15 // pred_check_branch
          %205 = sbr.rel (%p203) target = $region28
        $region27: #{tpu_custom_call.1} parent=15 // pred_region
          %s206 = sand.u32 %s18, 1
          %s207 = scalar_lea.sflag [#allocation8], %s206
          %s208 = sand.u32 %s103, 1
          %s209 = smul.addr %s208, 8
          %s210 = scalar_lea.vmem [#allocation9], %s209
          %s212 = ssub.s32 128, 128
          %213 = vsyncadd %s207, %s212
          %s214 = smul.addr %s25, 128
          %s215 = scalar_lea.hbm %s2, %s214
          %s217 = sshll.u32 %s210, 4
          %s218 = int_to_ptr.vmem [resolvable:$true] %s217
          %220 = dma.hbm_to_vmem [thread:$0]  %s215, 128, %s218, %s207
        $region28: #{tpu_custom_call.1} parent=15 // pred_fallthru
          _
      $region16: #{tpu_custom_call.1} parent=5 // pred_fallthru
        _
      %p221 = scmp.le.s32.totalorder 1, %s18
      %p222 = scmp.lt.s32.totalorder %s18, 3
      %p223 = pnand %p221, %p222
      %p224 = pneg %p223
      // Predicated region
      $region29: #{tpu_custom_call.1} parent=5 // pred_check
        _
      $region30: #{tpu_custom_call.1} parent=5 // pred_check_branch
        %226 = sbr.rel (%p223) target = $region32
      $region31: #{tpu_custom_call.1} parent=5 // pred_region
        %s227 = ssub.s32 %s18, 1
        %s228 = sand.u32 %s52, 1
        %s229 = scalar_lea.sflag [#allocation5], %s228
        %s230 = sand.u32 %s52, 1
        %s231 = scalar_lea.vmem [#allocation4], %s230
        // Predicated region
        $region33: #{tpu_custom_call.1} parent=31 // pred_check
          %p232 = pneg %p65
        $region34: #{tpu_custom_call.1} parent=31 // pred_check_branch
          %234 = sbr.rel (%p232) target = $region36
        $region35: #{tpu_custom_call.1} parent=31 // pred_region
          %235 = dma.done %s229, 16
        $region36: #{tpu_custom_call.1} parent=31 // pred_fallthru
          _
        %s236 = sand.u32 %s23, 1
        %s237 = scalar_lea.sflag [#allocation8], %s236
        %s238 = sand.u32 %s80, 1
        %s239 = smul.addr %s238, 8
        %s240 = scalar_lea.vmem [#allocation7], %s239
        // Predicated region
        $region37: #{tpu_custom_call.1} parent=31 // pred_check
          %p241 = pneg %p93
        $region38: #{tpu_custom_call.1} parent=31 // pred_check_branch
          %243 = sbr.rel (%p241) target = $region40
        $region39: #{tpu_custom_call.1} parent=31 // pred_region
          %244 = dma.done %s237, 128
        $region40: #{tpu_custom_call.1} parent=31 // pred_fallthru
          _
        %s245 = sand.u32 %s23, 1
        %s246 = scalar_lea.sflag [#allocation8], %s245
        %s247 = sand.u32 %s106, 1
        %s248 = smul.addr %s247, 8
        %s249 = scalar_lea.vmem [#allocation9], %s248
        // Predicated region
        $region41: #{tpu_custom_call.1} parent=31 // pred_check
          %p250 = pneg %p119
        $region42: #{tpu_custom_call.1} parent=31 // pred_check_branch
          %252 = sbr.rel (%p250) target = $region44
        $region43: #{tpu_custom_call.1} parent=31 // pred_region
          %253 = dma.done %s246, 128
        $region44: #{tpu_custom_call.1} parent=31 // pred_fallthru
          _
        %s254 = sand.u32 %s52, 1
        %s255 = scalar_lea.sflag [#allocation5], %s254
        %s256 = sand.u32 %s52, 1
        %s257 = scalar_lea.vmem [#allocation4], %s256
        %p258 = pneg %p65
        %p259 = pneg %p62
        %s260 = sand.u32 %s23, 1
        %s261 = scalar_lea.sflag [#allocation8], %s260
        %s262 = sand.u32 %s80, 1
        %s263 = smul.addr %s262, 8
        %s264 = scalar_lea.vmem [#allocation7], %s263
        %p265 = pneg %p93
        %p266 = pneg %p90
        %s267 = sand.u32 %s23, 1
        %s268 = scalar_lea.sflag [#allocation8], %s267
        %s269 = sand.u32 %s106, 1
        %s270 = smul.addr %s269, 8
        %s271 = scalar_lea.vmem [#allocation9], %s270
        %p272 = pneg %p119
        %p273 = pneg %p116
        %p274 = pneg %p147
        %p275 = pneg %p144
        %s276 = sand.u32 %s134, 1
        %s277 = scalar_lea.sflag [#allocation6], %s276
        %s278 = sand.u32 %s134, 1
        %s279 = scalar_lea.vmem [#allocation10], %s278
        %p280 = scmp.eq.s32.totalorder %s30, 0
        // Predicated region
        $region45: #{tpu_custom_call.1} parent=31 // pred_check
          %p281 = pneg %p280
        $region46: #{tpu_custom_call.1} parent=31 // pred_check_branch
          %283 = sbr.rel (%p281) target = $region48
        $region47: #{tpu_custom_call.1} parent=31 // pred_region
          %v284 = vld [vmem:[%s231] sm:$0x1]
          %vm285 = vcmask 57344
          %286 = vst.msk [vmem:[#allocation2] sm:$0x1] %vm285, %v284
          %287 = vst.msk [vmem:[#allocation3] sm:$0x1] %vm285, 1.0
        $region48: #{tpu_custom_call.1} parent=31 // pred_fallthru
          _
        %v288 = vld [vmem:[%s240] sm:$0xff]
        %s289 = smul.u32 %s30, 8
        %s290 = scalar_lea.vmem %s249, %s289 [#allocation9]
        %v291 = vld [vmem:[%s290] sm:$0xff]
        %vm292 = vcmask 261120
        %v294 = vsel %vm292, %v291, 0
        %v297 = vsel %vm292, %v288, 0
        %299 = vmatprep.subr.mxu0 0.0
        %300 = vmatpush1.xpose.msra.mxu0 0.0
        %301 = vmatprep.subr.mxu0 0.0
        %302 = vmatpush1.xpose.msra.mxu0 0.0
        %303 = vmatprep.subr.mxu0 0.0
        %304 = vmatpush1.xpose.msra.mxu0 0.0
        %305 = vmatprep.subr.mxu0 0.0
        %306 = vmatpush1.xpose.msra.mxu0 0.0
        %307 = vmatprep.subr.mxu0 0.0
        %308 = vmatpush1.xpose.msra.mxu0 0.0
        %309 = vmatprep.subr.mxu0 0.0
        %310 = vmatpush1.xpose.msra.mxu0 0.0
        %311 = vmatprep.subr.mxu0 0.0
        %312 = vmatpush1.xpose.msra.mxu0 0.0
        %313 = vmatprep.subr.mxu0 0.0
        %314 = vmatpush1.xpose.msra.mxu0 0.0
        %315 = vmatprep.subr.mxu0 0.0
        %316 = vmatpush1.xpose.msra.mxu0 0.0
        %317 = vmatprep.subr.mxu0 0.0
        %318 = vmatpush1.xpose.msra.mxu0 0.0
        %319 = vmatprep.subr.mxu0 0.0
        %320 = vmatpush1.xpose.msra.mxu0 0.0
        %321 = vmatprep.subr.mxu0 0.0
        %322 = vmatpush1.xpose.msra.mxu0 0.0
        %323 = vmatprep.subr.mxu0 0.0
        %324 = vmatpush1.xpose.msra.mxu0 0.0
        %325 = vmatprep.subr.mxu0 0.0
        %326 = vmatpush1.xpose.msra.mxu0 0.0
        %327 = vmatprep.subr.mxu0 0.0
        %328 = vmatpush1.xpose.msra.mxu0 0.0
        %329 = vmatprep.subr.mxu0 0.0
        %330 = vmatpush1.xpose.msra.mxu0 %v297
        %331 = vmatprep.subr.mxu0 0.0
        %332 = vmatpush2.xpose.msra.mxu0 0.0
        %333 = vmatprep.subr.mxu0 0.0
        %334 = vmatpush2.xpose.msra.mxu0 0.0
        %335 = vmatprep.subr.mxu0 0.0
        %336 = vmatpush2.xpose.msra.mxu0 0.0
        %337 = vmatprep.subr.mxu0 0.0
        %338 = vmatpush2.xpose.msra.mxu0 0.0
        %339 = vmatprep.subr.mxu0 0.0
        %340 = vmatpush2.xpose.msra.mxu0 0.0
        %341 = vmatprep.subr.mxu0 0.0
        %342 = vmatpush2.xpose.msra.mxu0 0.0
        %343 = vmatprep.subr.mxu0 0.0
        %344 = vmatpush2.xpose.msra.mxu0 0.0
        %345 = vmatprep.subr.mxu0 0.0
        %346 = vmatpush2.xpose.msra.mxu0 0.0
        %347 = vmatprep.subr.mxu0 0.0
        %348 = vmatpush2.xpose.msra.mxu0 0.0
        %349 = vmatprep.subr.mxu0 0.0
        %350 = vmatpush2.xpose.msra.mxu0 0.0
        %351 = vmatprep.subr.mxu0 0.0
        %352 = vmatpush2.xpose.msra.mxu0 0.0
        %353 = vmatprep.subr.mxu0 0.0
        %354 = vmatpush2.xpose.msra.mxu0 0.0
        %355 = vmatprep.subr.mxu0 0.0
        %356 = vmatpush2.xpose.msra.mxu0 0.0
        %357 = vmatprep.subr.mxu0 0.0
        %358 = vmatpush2.xpose.msra.mxu0 0.0
        %359 = vmatprep.subr.mxu0 0.0
        %360 = vmatpush2.xpose.msra.mxu0 0.0
        %361 = vmatprep.subr.mxu0 0.0
        %362 = vmatpush2.xpose.msra.mxu0 0.0
        %363 = vmatprep.mubr.f32.mxu0 0.0
        %364 = vmatmul.mubr.f32.gmra.mxu0 %v294
        %v365 = vpop.f32.mrf.mxu0
        %v366 = vadd.f32 0.0, %v365
        %v367 = vpop.f32.mrf.mxu0
        %368 = vdwg.mxu0
        %p369 = scmp.eq.s32.totalorder %s29, %s30
        // Predicated region
        $region49: #{tpu_custom_call.1} parent=31 // pred_check
          %p370 = pneg %p369
        $region50: #{tpu_custom_call.1} parent=31 // pred_check_branch
          %372 = sbr.rel (%p370) target = $region52
        $region51: #{tpu_custom_call.1} parent=31 // pred_region
          %v373 = vlaneseq
          %v374 = vshrl.u32 %v373, 7
          %v375 = vlaneseq
          %v376 = vand.u32 %v375, 127
          %vm377 = vcmp.eq.s32.totalorder %v374, %v376
          %v378 = vsel %vm377, -142.85715, %v366
          %v379 = vld [vmem:[#allocation2] sm:$0x1]
          %v380 = vld [vmem:[#allocation3] sm:$0x1]
          %vm381 = vcmask 64512
          %v382 = vsel %vm381, %v378, -inf
          %v383 = vrot.slane %v382, 4
          %v384 = vmax.f32 %v382, %v383
          %v385 = vrot.slane %v384, 2
          %v386 = vmax.f32 %v384, %v385
          %v387 = vrot.slane %v386, 1
          %v388 = vmax.f32 %v386, %v387
          %v389 = vmax.f32 %v379, %v388
          %v391 = vlaneseq
          %v392 = vshrl.u32 %v391, 7
          %v393 = vsub.s32 0, %v392
          %v394 = vrot.slane %v389, %v393
          %v396 = vsub.f32 %v378, %v394
          %v397 = vmul.f32 %v396, 1.442695
          %v398 = vpow.pop %v397
          %v399 = vsel %vm381, %v398, 0.0
          %v400 = vrot.slane %v399, 4
          %v401 = vadd.f32 %v399, %v400
          %v402 = vrot.slane %v401, 2
          %v403 = vadd.f32 %v401, %v402
          %v404 = vrot.slane %v403, 1
          %v405 = vadd.f32 %v403, %v404
          %v406 = vsub.f32 %v379, %v389
          %v407 = vmul.f32 %v406, 1.442695
          %v408 = vpow.pop %v407
          %v409 = vmul.f32 %v408, %v380
          %v410 = vadd.f32 %v409, %v405
          %vm411 = vcmask 57344
          %412 = vst.msk [vmem:[#allocation3] sm:$0x1] %vm411, %v410
          %413 = vst.msk [vmem:[#allocation2] sm:$0x1] %vm411, %v389
        $region52: #{tpu_custom_call.1} parent=31 // pred_fallthru
          _
        %p414 = scmp.ne.s32.totalorder %s29, %s30
        // Predicated region
        $region53: #{tpu_custom_call.1} parent=31 // pred_check
          %p415 = pneg %p414
        $region54: #{tpu_custom_call.1} parent=31 // pred_check_branch
          %417 = sbr.rel (%p415) target = $region56
        $region55: #{tpu_custom_call.1} parent=31 // pred_region
          %v418 = vld [vmem:[#allocation2] sm:$0x1]
          %v419 = vld [vmem:[#allocation3] sm:$0x1]
          %vm420 = vcmask 64512
          %v421 = vsel %vm420, %v366, -inf
          %v422 = vrot.slane %v421, 4
          %v423 = vmax.f32 %v421, %v422
          %v424 = vrot.slane %v423, 2
          %v425 = vmax.f32 %v423, %v424
          %v426 = vrot.slane %v425, 1
          %v427 = vmax.f32 %v425, %v426
          %v428 = vmax.f32 %v418, %v427
          %v430 = vlaneseq
          %v431 = vshrl.u32 %v430, 7
          %v432 = vsub.s32 0, %v431
          %v433 = vrot.slane %v428, %v432
          %v435 = vsub.f32 %v366, %v433
          %v436 = vmul.f32 %v435, 1.442695
          %v437 = vpow.pop %v436
          %v438 = vsel %vm420, %v437, 0.0
          %v439 = vrot.slane %v438, 4
          %v440 = vadd.f32 %v438, %v439
          %v441 = vrot.slane %v440, 2
          %v442 = vadd.f32 %v440, %v441
          %v443 = vrot.slane %v442, 1
          %v444 = vadd.f32 %v442, %v443
          %v445 = vsub.f32 %v418, %v428
          %v446 = vmul.f32 %v445, 1.442695
          %v447 = vpow.pop %v446
          %v448 = vmul.f32 %v447, %v419
          %v449 = vadd.f32 %v448, %v444
          %vm450 = vcmask 57344
          %451 = vst.msk [vmem:[#allocation3] sm:$0x1] %vm450, %v449
          %452 = vst.msk [vmem:[#allocation2] sm:$0x1] %vm450, %v428
        $region56: #{tpu_custom_call.1} parent=31 // pred_fallthru
          _
        // Predicated region
        $region57: #{tpu_custom_call.1} parent=31 // pred_check
          %p453 = pneg %p280
        $region58: #{tpu_custom_call.1} parent=31 // pred_check_branch
          %455 = sbr.rel (%p453) target = $region60
        $region59: #{tpu_custom_call.1} parent=31 // pred_region
          %v456 = vld [vmem:[#allocation2] sm:$0x1]
          %v457 = vld [vmem:[#allocation3] sm:$0x1]
          %v458 = vlog2.pop %v457
          %v459 = vmul.f32 %v458, 0.6931472
          %v460 = vadd.f32 %v456, %v459
          %v461 = vld [vmem:[%s231] sm:$0x1]
          %v462 = vsub.f32 %v460, %v461
          %vm463 = vcmask 57344
          %464 = vst.msk [vmem:[%s279] sm:$0x1] %vm463, %v462
        $region60: #{tpu_custom_call.1} parent=31 // pred_fallthru
          _
        %s465 = sand.u32 %s134, 1
        %s466 = scalar_lea.sflag [#allocation6], %s465
        %s467 = sand.u32 %s134, 1
        %s468 = scalar_lea.vmem [#allocation10], %s467
        // Predicated region
        $region61: #{tpu_custom_call.1} parent=31 // pred_check
          %p469 = pneg %p144
        $region62: #{tpu_custom_call.1} parent=31 // pred_check_branch
          %471 = sbr.rel (%p469) target = $region64
        $region63: #{tpu_custom_call.1} parent=31 // pred_region
          %s473 = ssub.s32 16, 16
          %474 = vsyncadd %s466, %s473
          %s475 = sadd.s32 %s29, %s28
          %s476 = smul.addr %s475, 16
          %s477 = scalar_lea.hbm %s3, %s476
          %s479 = sshll.u32 %s468, 4
          %s480 = int_to_ptr.vmem [resolvable:$true] %s479
          %482 = dma.vmem_to_hbm [thread:$0]  %s480, 16, %s477, %s466
        $region64: #{tpu_custom_call.1} parent=31 // pred_fallthru
          _
      $region32: #{tpu_custom_call.1} parent=5 // pred_fallthru
        _
      %p483 = scmp.le.s32.totalorder 2, %s18
      // Predicated region
      $region65: #{tpu_custom_call.1} parent=5 // pred_check
        %p484 = pneg %p483
      $region66: #{tpu_custom_call.1} parent=5 // pred_check_branch
        %486 = sbr.rel (%p484) target = $region68
      $region67: #{tpu_custom_call.1} parent=5 // pred_region
        %s487 = ssub.s32 %s18, 2
        // Predicated region
        $region69: #{tpu_custom_call.1} parent=67 // pred_check
          %p488 = pneg %p150
        $region70: #{tpu_custom_call.1} parent=67 // pred_check_branch
          %490 = sbr.rel (%p488) target = $region72
        $region71: #{tpu_custom_call.1} parent=67 // pred_region
          %s491 = sand.u32 %s135, 1
          %s492 = scalar_lea.sflag [#allocation6], %s491
          %s493 = sand.u32 %s135, 1
          %s494 = scalar_lea.vmem [#allocation10], %s493
          %495 = dma.done %s492, 16
        $region72: #{tpu_custom_call.1} parent=67 // pred_fallthru
          _
      $region68: #{tpu_custom_call.1} parent=5 // pred_fallthru
        _
    $region6: #{tpu_custom_call.1} parent=1 // loop_footer
      %s22 = sadd.s32 1, %s18
    $region7: #{tpu_custom_call.1} parent=1 // loop_footer_branch
      %17 = sbr.rel target = $region3
    $region8: #{tpu_custom_call.1} parent=1 // loop_exit
      _
    %496 = vsyncpa [#allocation5], 1
    %s497 = scalar_lea.sflag [#allocation5], 1
    %498 = vsyncpa %s497, 1
    %499 = vsyncpa [#allocation8], 1
    %s500 = scalar_lea.sflag [#allocation8], 1
    %501 = vsyncpa %s500, 1
    %502 = vsyncpa [#allocation6], 1
    %s503 = scalar_lea.sflag [#allocation6], 1
    %504 = vsyncpa %s503, 1

</llo_original>
